<compile_context>
chip_gen: v7x
topology: tpu7x:2x2x1
jax: 0.10.0
libtpu: 0.0.40
codegen_flags: <defaults>
</compile_context>

<pallas_src>
import functools

import jax
import jax.numpy as jnp
from jax import lax
from jax.experimental import pallas as pl
from jax.experimental.pallas import tpu as pltpu


_VMEM_BUDGET = 30 * 1024 * 1024   # target tile footprint (double-buffered)
_VMEM_LIMIT = 48 * 1024 * 1024    # scoped VMEM limit: safe on v7x (64 MiB phys)
_TM_CANDIDATES = (2048, 1536, 1024, 768, 512, 384, 256, 128, 64, 32, 16, 8)
_TN_CANDIDATES = (512, 256, 128)
_TK_CANDIDATES = (2048, 1024, 512, 256, 128)


def _round_up(v, m):
    return (v + m - 1) // m * m


def _pick(total, candidates, fits):
    """Largest candidate that divides `total` and satisfies `fits`."""
    for c in candidates:
        if c <= total and total % c == 0 and fits(c):
            return c
    return candidates[-1]


# ----------------------------------------------------------------------------
# Kernels
# ----------------------------------------------------------------------------
def _dense_kernel_fused(x_ref, w_ref, b_ref, o_ref):
    # Single K step: no accumulator scratch, direct lane-dense store.
    # x_ref: (tm, K)  w_ref: (K, tn)  b_ref: (1, tn)  o_ref: (tm, tn)
    acc = jnp.dot(x_ref[...], w_ref[...], preferred_element_type=jnp.float32)
    o_ref[...] = (acc + b_ref[...]).astype(o_ref.dtype)


def _dense_kernel_ktiled(x_ref, w_ref, b_ref, o_ref, acc_ref, *, K, tk):
    # x_ref: (tm, tk)  w_ref: (tk, tn)  b_ref: (1, tn)  o_ref/acc_ref: (tm, tn)
    k = pl.program_id(2)

    @pl.when(k == 0)
    def _():
        acc_ref[...] = jnp.zeros_like(acc_ref)

    x_tile = x_ref[...]
    if K % tk != 0:
        # Last K block hangs over the end of the *unpadded* x: zero the
        # out-of-bounds lanes so garbage never pollutes the reduction.
        col = k * tk + lax.broadcasted_iota(jnp.int32, x_tile.shape, 1)
        x_tile = jnp.where(col < K, x_tile, jnp.zeros_like(x_tile))

    acc_ref[...] += jnp.dot(x_tile, w_ref[...],
                            preferred_element_type=jnp.float32)

    @pl.when(k == pl.num_programs(2) - 1)
    def _():
        o_ref[...] = (acc_ref[...] + b_ref[...]).astype(o_ref.dtype)


# ----------------------------------------------------------------------------
# Wrapper
# ----------------------------------------------------------------------------
def _dense_matmul(x2d, weight, bias):
    """x2d: (M, K), weight: (N, K) torch layout, bias: (N,) -> (M, N)."""
    M, K = x2d.shape
    N = weight.shape[0]
    dt = x2d.dtype
    isz = jnp.dtype(dt).itemsize

    # Sublane-align M.  Typical FNO M (= batch*X*Y*Z) is already a multiple of
    # 8, so this is a no-op and x is never copied in HBM.
    Mp = _round_up(M, 8)
    if Mp != M:
        x2d = jnp.pad(x2d, ((0, Mp - M), (0, 0)))

    # Output columns padded to a lane multiple for unmasked (dense) stores.
    Np = _round_up(N, 128)
    tn = _pick(Np, _TN_CANDIDATES, lambda c: True)

    single_step = _round_up(K, 128) <= 2048  # full-K panel fits comfortably

    if single_step:
        # Weight -> (K, N) MXU layout; transpose fuses with the tiny pad copy.
        w_p = jnp.pad(weight.T.astype(dt), ((0, 0), (0, Np - N)))      # (K, Np)
        b_p = jnp.pad(bias.astype(dt), (0, Np - N)).reshape(1, Np)

        def fits(tm):
            foot = (2 * tm * K * isz          # x panel (double-buffered)
                    + 2 * K * tn * isz        # W tile
                    + 2 * tm * tn * isz       # output tile
                    + 2 * tn * isz)           # bias
            return foot <= _VMEM_BUDGET

        tm = _pick(Mp, _TM_CANDIDATES, fits)
        grid = (Mp // tm, Np // tn)

        out_p = pl.pallas_call(
            _dense_kernel_fused,
            out_shape=jax.ShapeDtypeStruct((Mp, Np), dt),
            grid_spec=pltpu.PrefetchScalarGridSpec(
                num_scalar_prefetch=0,
                grid=grid,
                in_specs=[
                    # x panel is independent of j -> stays resident across the
                    # N axis, so x is streamed from HBM exactly once.
                    pl.BlockSpec((tm, K), lambda i, j: (i, 0)),
                    pl.BlockSpec((K, tn), lambda i, j: (0, j)),
                    pl.BlockSpec((1, tn), lambda i, j: (0, j)),
                ],
                out_specs=pl.BlockSpec((tm, tn), lambda i, j: (i, j)),
            ),
            compiler_params=pltpu.CompilerParams(
                dimension_semantics=("parallel", "parallel"),
                vmem_limit_bytes=_VMEM_LIMIT,
            ),
        )(x2d, w_p, b_p)
    else:
        # General K-tiled path with an f32 VMEM accumulator.
        Kp = _round_up(K, 128)
        tk = _pick(Kp, _TK_CANDIDATES, lambda c: True)
        # Only the small weight is zero-padded along K; x stays unpadded and
        # its K tail is masked in-kernel.
        w_p = jnp.pad(weight.T.astype(dt), ((0, Kp - K), (0, Np - N)))  # (Kp, Np)
        b_p = jnp.pad(bias.astype(dt), (0, Np - N)).reshape(1, Np)

        def fits(tm):
            foot = (2 * tm * tk * isz
                    + 2 * tk * tn * isz
                    + 2 * tm * tn * isz
                    + tm * tn * 4)            # f32 accumulator
            return foot <= _VMEM_BUDGET

        tm = _pick(Mp, _TM_CANDIDATES, fits)
        grid = (Mp // tm, Np // tn, Kp // tk)

        kernel = functools.partial(_dense_kernel_ktiled, K=K, tk=tk)
        out_p = pl.pallas_call(
            kernel,
            out_shape=jax.ShapeDtypeStruct((Mp, Np), dt),
            grid_spec=pltpu.PrefetchScalarGridSpec(
                num_scalar_prefetch=0,
                grid=grid,
                in_specs=[
                    pl.BlockSpec((tm, tk), lambda i, j, k: (i, k)),
                    pl.BlockSpec((tk, tn), lambda i, j, k: (k, j)),
                    pl.BlockSpec((1, tn), lambda i, j, k: (0, j)),
                ],
                out_specs=pl.BlockSpec((tm, tn), lambda i, j, k: (i, j)),
                scratch_shapes=[pltpu.VMEM((tm, tn), jnp.float32)],
            ),
            compiler_params=pltpu.CompilerParams(
                dimension_semantics=("parallel", "parallel", "arbitrary"),
                vmem_limit_bytes=_VMEM_LIMIT,
            ),
        )(x2d, w_p, b_p)

    if (Mp, Np) != (M, N):
        out_p = out_p[:M, :N]
    return out_p


def dense_forward(x, weight, bias):
    """Forward pass of Dense.

    x:      (..., input_dim) float32
    weight: (output_dim, input_dim) float32   (torch nn.Linear layout)
    bias:   (output_dim,) float32
    returns (..., output_dim, 1, 1, 1) float32
    """
    *batch_shape, K = x.shape
    N = weight.shape[0]
    x2d = x.reshape(-1, K)
    y2d = _dense_matmul(x2d, weight, bias)          # (B_total, N)
    # Trailing singleton feature-map dims: pure metadata reshape.
    return y2d.reshape(*batch_shape, N, 1, 1, 1)


def _reference(x, weight, bias):
    y = jnp.dot(x, weight.T) + bias
    return y[..., None, None, None]


if __name__ == "__main__":
    # Small deterministic config: batch=2, input_dim=32, output_dim=64.
    B, IN_DIM, OUT_DIM = 2, 32, 64

    key = jax.random.PRNGKey(0)
    kx, kw, kb = jax.random.split(key, 3)

    x = jax.random.normal(kx, (B, IN_DIM), dtype=jnp.float32)
    # torch nn.Linear default init: uniform(-1/sqrt(in), 1/sqrt(in))
    bound = 1.0 / (IN_DIM ** 0.5)
    weight = jax.random.uniform(kw, (OUT_DIM, IN_DIM), jnp.float32, -bound, bound)
    bias = jax.random.uniform(kb, (OUT_DIM,), jnp.float32, -bound, bound)

    out = dense_forward(x, weight, bias)
    out = jax.block_until_ready(out)

    ref = _reference(x, weight, bias)
    assert out.shape == (B, OUT_DIM, 1, 1, 1), out.shape
    assert jnp.allclose(out, ref, atol=1e-4, rtol=1e-4)

    print("KERNEL_OK")
</pallas_src>

<mosaic_0001>
module attributes {stable_mosaic.version = 11 : i64} {
  func.func @_dense_kernel_fused(%arg0: i32, %arg1: i32, %arg2: memref<8x32xf32, #tpu.memory_space<vmem>>, %arg3: memref<32x128xf32, #tpu.memory_space<vmem>>, %arg4: memref<1x128xf32, #tpu.memory_space<vmem>>, %arg5: memref<8x128xf32, #tpu.memory_space<vmem>>) attributes {dimension_semantics = [#tpu.dimension_semantics<parallel>, #tpu.dimension_semantics<parallel>], iteration_bounds = array<i64: 1, 1>, scalar_prefetch = 0 : i64, scratch_operands = 0 : i64, tpu.core_type = #tpu.core_type<tc>, window_params = [{transform_indices = @transform_0, window_bounds = array<i64: 8, 32>}, {transform_indices = @transform_1, window_bounds = array<i64: 32, 128>}, {transform_indices = @transform_2, window_bounds = array<i64: 1, 128>}, {transform_indices = @transform_3, window_bounds = array<i64: 8, 128>}]} {
    %c0 = arith.constant 0 : index
    %c0_0 = arith.constant 0 : index
    %0 = vector.load %arg2[%c0, %c0_0] : memref<8x32xf32, #tpu.memory_space<vmem>>, vector<8x32xf32>
    %c0_1 = arith.constant 0 : index
    %c0_2 = arith.constant 0 : index
    %1 = vector.load %arg3[%c0_1, %c0_2] : memref<32x128xf32, #tpu.memory_space<vmem>>, vector<32x128xf32>
    %cst = arith.constant dense<0.000000e+00> : vector<8x128xf32>
    %2 = tpu.matmul %0, %1, %cst {dimension_numbers = #tpu.dot_dimension_numbers<[1], [0], [0], [1], [0, 0, 1, 1], [], []>} : vector<8x32xf32>, vector<32x128xf32>, vector<8x128xf32> -> vector<8x128xf32>
    %c0_3 = arith.constant 0 : index
    %c0_4 = arith.constant 0 : index
    %3 = vector.load %arg4[%c0_3, %c0_4] : memref<1x128xf32, #tpu.memory_space<vmem>>, vector<1x128xf32>
    %4 = vector.broadcast %3 : vector<1x128xf32> to vector<8x128xf32>
    %5 = arith.addf %2, %4 : vector<8x128xf32>
    %c0_5 = arith.constant 0 : index
    %c0_6 = arith.constant 0 : index
    %6 = vector.load %arg5[%c0_5, %c0_6] : memref<8x128xf32, #tpu.memory_space<vmem>>, vector<8x128xf32>
    tpu.vector_store %arg5[%c0_5, %c0_6], %5 {strides = array<i32>} : memref<8x128xf32, #tpu.memory_space<vmem>>, vector<8x128xf32>,
    return
  }
  func.func @transform_0(%arg0: i32, %arg1: i32) -> (i32, i32) {
    %c0_i32 = arith.constant 0 : i32
    %c0_i32_0 = arith.constant 0 : i32
    return %arg0, %c0_i32 : i32, i32
  }
  func.func @transform_1(%arg0: i32, %arg1: i32) -> (i32, i32) {
    %c0_i32 = arith.constant 0 : i32
    %c0_i32_0 = arith.constant 0 : i32
    return %c0_i32, %arg1 : i32, i32
  }
  func.func @transform_2(%arg0: i32, %arg1: i32) -> (i32, i32) {
    %c0_i32 = arith.constant 0 : i32
    %c0_i32_0 = arith.constant 0 : i32
    return %c0_i32, %arg1 : i32, i32
  }
  func.func @transform_3(%arg0: i32, %arg1: i32) -> (i32, i32) {
    %c0_i32 = arith.constant 0 : i32
    return %arg0, %arg1 : i32, i32
  }
}

</mosaic_0001>

<llo_original>
// kernel: tpu_custom_call.1
$region0: #{tpu_custom_call.1}
  #allocation0 [shape = 'u32[]', space=smem, size = 0x4, offset = 0x4, fixed_abs, tag = 'smem constant byte address 0x4 - core index']
  #allocation1 [shape = 'u32[144,128]{1,0:T(1,128)}', space=vmem, size = 0x12000, scoped, tag = 'internal scratch']
  %s0 = inlined_call_operand.hbm [shape: f32[8,32], index: 0, kind: input, shape index: {}]
  %s1 = inlined_call_operand.hbm [shape: f32[32,128], index: 1, kind: input, shape index: {}]
  %s2 = inlined_call_operand.vmem [shape: f32[1,128], index: 2, kind: input, shape index: {}]
  %s3 = inlined_call_operand.hbm [shape: f32[8,128], index: 3, kind: output, shape index: {}]
  %s4 = sld [smem:[#allocation0]]
  $region30: #{tpu_custom_call.1} parent=0
    _
  %s6 = ssub.s32 1, %s4
  %s7 = scalar_select 0, %s6, %s4
  $region1: #{tpu_custom_call.1} parent=0
    #allocation2 [shape = 'u8[4096]{0}', space=vmem, size = 0x1000, scoped, tag = 'input window, operand 0, single buffered']
    #allocation3 [shape = 's32[1]{0}', space=sflag, size = 0x4, scoped, tag = 'scoped memory for tpu_custom_call.1']
    #allocation4 [shape = 's32[1]{0}', space=sflag, size = 0x4, scoped, tag = 'scoped memory for tpu_custom_call.1']
    #allocation5 [shape = 'u8[16384]{0}', space=vmem, size = 0x4000, scoped, tag = 'input window, operand 1, single buffered']
    #allocation6 [shape = 's32[1]{0}', space=sflag, size = 0x4, scoped, tag = 'scoped memory for tpu_custom_call.1']
    #allocation7 [shape = 'u8[4096]{0}', space=vmem, size = 0x1000, scoped, tag = 'output window, operand 0, single buffered']
    %8 = vsyncpa [#allocation3], 0
    %9 = vsyncpa [#allocation6], 0
    %10 = vsyncpa [#allocation4], 0
    // Predicated region
    $region2: #{tpu_custom_call.1} parent=1 // pred_check
      _
    $region3: #{tpu_custom_call.1} parent=1 // pred_check_branch
      %12 = sbr.rel (0) target = $region5
    $region4: #{tpu_custom_call.1} parent=1 // pred_region
      %s14 = ssub.s32 128, 128
      %15 = vsyncadd [#allocation3], %s14
      %s17 = sshll.u32 [#allocation2], 4
      %s18 = int_to_ptr.vmem [resolvable:$true] %s17
      %20 = dma.hbm_to_vmem [thread:$0]  %s0, 128, %s18, [#allocation3]
    $region5: #{tpu_custom_call.1} parent=1 // pred_fallthru
      _
    // Predicated region
    $region6: #{tpu_custom_call.1} parent=1 // pred_check
      _
    $region7: #{tpu_custom_call.1} parent=1 // pred_check_branch
      %22 = sbr.rel (0) target = $region9
    $region8: #{tpu_custom_call.1} parent=1 // pred_region
      %s24 = ssub.s32 512, 512
      %25 = vsyncadd [#allocation6], %s24
      %s26 = sshll.u32 [#allocation5], 4
      %s27 = int_to_ptr.vmem [resolvable:$true] %s26
      %32 = dma.hbm_to_vmem [thread:$0]  %s1, 512, %s27, [#allocation6], 128, 128, 8
    $region9: #{tpu_custom_call.1} parent=1 // pred_fallthru
      _
    // Predicated region
    $region10: #{tpu_custom_call.1} parent=1 // pred_check
      _
    $region11: #{tpu_custom_call.1} parent=1 // pred_check_branch
      %34 = sbr.rel (0) target = $region13
    $region12: #{tpu_custom_call.1} parent=1 // pred_region
      _
    $region13: #{tpu_custom_call.1} parent=1 // pred_fallthru
      _
    // Predicated region
    $region14: #{tpu_custom_call.1} parent=1 // pred_check
      _
    $region15: #{tpu_custom_call.1} parent=1 // pred_check_branch
      %36 = sbr.rel (0) target = $region17
    $region16: #{tpu_custom_call.1} parent=1 // pred_region
      %37 = dma.done [#allocation3], 128
    $region17: #{tpu_custom_call.1} parent=1 // pred_fallthru
      _
    // Predicated region
    $region18: #{tpu_custom_call.1} parent=1 // pred_check
      _
    $region19: #{tpu_custom_call.1} parent=1 // pred_check_branch
      %39 = sbr.rel (0) target = $region21
    $region20: #{tpu_custom_call.1} parent=1 // pred_region
      %40 = dma.done [#allocation6], 512
    $region21: #{tpu_custom_call.1} parent=1 // pred_fallthru
      _
    %v41 = vld [vmem:[#allocation2] sm:$0xff]
    %v42 = vld [vmem:[#allocation5] sm:$0xff]
    %v43 = vld [vmem:[#allocation5 + $0x8] sm:$0xff]
    %v44 = vld [vmem:[#allocation5 + $0x10] sm:$0xff]
    %v45 = vld [vmem:[#allocation5 + $0x18] sm:$0xff]
    %v46 = vld [vmem:[%s2] sm:$0x1]
    %v48 = vlaneseq
    %v49 = vshrl.u32 %v48, 7
    %v50 = vsub.s32 0, %v49
    %v51 = vrot.slane %v46, %v50
    %vm53 = vcmask 261120
    %v55 = vsel %vm53, %v41, 0
    %57 = vmatprep.subr.mxu0 0.0
    %58 = vmatpush1.msra.mxu0 %v42
    %59 = vmatprep.subr.mxu0 0.0
    %60 = vmatpush1.msra.mxu0 %v43
    %61 = vmatprep.subr.mxu0 0.0
    %62 = vmatpush1.msra.mxu0 %v44
    %63 = vmatprep.subr.mxu0 0.0
    %64 = vmatpush1.msra.mxu0 %v45
    %65 = vmatprep.subr.mxu0 0.0
    %66 = vmatpush1.msra.mxu0 0.0
    %67 = vmatprep.subr.mxu0 0.0
    %68 = vmatpush1.msra.mxu0 0.0
    %69 = vmatprep.subr.mxu0 0.0
    %70 = vmatpush1.msra.mxu0 0.0
    %71 = vmatprep.subr.mxu0 0.0
    %72 = vmatpush1.msra.mxu0 0.0
    %73 = vmatprep.subr.mxu0 0.0
    %74 = vmatpush1.msra.mxu0 0.0
    %75 = vmatprep.subr.mxu0 0.0
    %76 = vmatpush1.msra.mxu0 0.0
    %77 = vmatprep.subr.mxu0 0.0
    %78 = vmatpush1.msra.mxu0 0.0
    %79 = vmatprep.subr.mxu0 0.0
    %80 = vmatpush1.msra.mxu0 0.0
    %81 = vmatprep.subr.mxu0 0.0
    %82 = vmatpush1.msra.mxu0 0.0
    %83 = vmatprep.subr.mxu0 0.0
    %84 = vmatpush1.msra.mxu0 0.0
    %85 = vmatprep.subr.mxu0 0.0
    %86 = vmatpush1.msra.mxu0 0.0
    %87 = vmatprep.subr.mxu0 0.0
    %88 = vmatpush1.msra.mxu0 0.0
    %89 = vmatprep.subr.mxu0 0.0
    %90 = vmatpush1.msra.mxu0 0.0
    %91 = vmatprep.subr.mxu0 0.0
    %92 = vmatpush1.msra.mxu0 0.0
    %93 = vmatprep.subr.mxu0 0.0
    %94 = vmatpush1.msra.mxu0 0.0
    %95 = vmatprep.subr.mxu0 0.0
    %96 = vmatpush1.msra.mxu0 0.0
    %97 = vmatprep.subr.mxu0 0.0
    %98 = vmatpush1.msra.mxu0 0.0
    %99 = vmatprep.subr.mxu0 0.0
    %100 = vmatpush1.msra.mxu0 0.0
    %101 = vmatprep.subr.mxu0 0.0
    %102 = vmatpush1.msra.mxu0 0.0
    %103 = vmatprep.subr.mxu0 0.0
    %104 = vmatpush1.msra.mxu0 0.0
    %105 = vmatprep.subr.mxu0 0.0
    %106 = vmatpush1.msra.mxu0 0.0
    %107 = vmatprep.subr.mxu0 0.0
    %108 = vmatpush1.msra.mxu0 0.0
    %109 = vmatprep.subr.mxu0 0.0
    %110 = vmatpush1.msra.mxu0 0.0
    %111 = vmatprep.subr.mxu0 0.0
    %112 = vmatpush1.msra.mxu0 0.0
    %113 = vmatprep.subr.mxu0 0.0
    %114 = vmatpush1.msra.mxu0 0.0
    %115 = vmatprep.subr.mxu0 0.0
    %116 = vmatpush1.msra.mxu0 0.0
    %117 = vmatprep.subr.mxu0 0.0
    %118 = vmatpush1.msra.mxu0 0.0
    %119 = vmatprep.subr.mxu0 0.0
    %120 = vmatpush1.msra.mxu0 0.0
    %121 = vmatprep.mubr.f32.mxu0 0.0
    %122 = vmatmul.mubr.f32.gmra.mrb[0].mxu0 %v55
    %v123 = vpop.f32.mrb[0].mxu0
    %v124 = vadd.f32 %v51, %v123
    %v125 = vpop.f32.mrb[0].mxu0
    %126 = vdwg.mxu0
    %127 = vst [vmem:[#allocation7] sm:$0xff] %v124
    // Predicated region
    $region22: #{tpu_custom_call.1} parent=1 // pred_check
      _
    $region23: #{tpu_custom_call.1} parent=1 // pred_check_branch
      %129 = sbr.rel (0) target = $region25
    $region24: #{tpu_custom_call.1} parent=1 // pred_region
      %s131 = ssub.s32 128, 128
      %132 = vsyncadd [#allocation4], %s131
      %s134 = sshll.u32 [#allocation7], 4
      %s135 = int_to_ptr.vmem [resolvable:$true] %s134
      %137 = dma.vmem_to_hbm [thread:$0]  %s135, 128, %s3, [#allocation4]
    $region25: #{tpu_custom_call.1} parent=1 // pred_fallthru
      _
    // Predicated region
    $region26: #{tpu_custom_call.1} parent=1 // pred_check
      _
    $region27: #{tpu_custom_call.1} parent=1 // pred_check_branch
      %139 = sbr.rel (0) target = $region29
    $region28: #{tpu_custom_call.1} parent=1 // pred_region
      %140 = dma.done [#allocation4], 128
    $region29: #{tpu_custom_call.1} parent=1 // pred_fallthru
      _
    %141 = vsyncpa [#allocation3], 1
    %142 = vsyncpa [#allocation6], 1
    %143 = vsyncpa [#allocation4], 1

</llo_original>
